<compile_context>
chip_gen: v6e
topology: v6e:2x2x1
jax: 0.10.0
libtpu: 0.0.40
codegen_flags: <defaults>
</compile_context>

<pallas_src>
import math
from functools import partial

import jax
import jax.numpy as jnp
from jax.experimental import pallas as pl
from jax.experimental.pallas import tpu as pltpu


def _round_up(v, m):
    return ((v + m - 1) // m) * m


# ----------------------------- Pallas kernel -------------------------------

def _bkan_fused_kernel(x_ref, *refs, degree, num_layers, in_pads):
    """Applies all KAN layers to one (tile_rows, in_pad_0) row tile.

    refs = (w_0, ..., w_{L-1}, o_ref, lhs_scratch).  w_l has shape
    ((degree+2)*in_pad_l, out_pad_l):
        rows [0, in_f)                          -> base_weight.T   (SiLU branch)
        rows [(k+1)*in_pad, (k+1)*in_pad+in_f)  -> C(d,k)*coeffs[:, :, k]
        all other rows / cols                   -> zeros (lane padding)
    """
    w_refs = refs[:num_layers]
    o_ref = refs[num_layers]
    lhs_ref = refs[num_layers + 1]               # bf16 VMEM scratch

    x = x_ref[...].astype(jnp.float32)           # padded lanes are exact zeros
    for li in range(num_layers):
        seg = in_pads[li]                        # per-segment lane width (128k)
        w = w_refs[li][...]                      # bf16, ((d+2)*seg, out_pad)

        # sigmoid via EUP exp + approx reciprocal (frees the VPU slot).
        e = jnp.exp(-x)
        sig = pl.reciprocal(1.0 + e, approx=True)

        # slot 0: SiLU(x) = x * sigmoid(x)  (full-width, lane-aligned store)
        lhs_ref[:, 0:seg] = (x * sig).astype(jnp.bfloat16)

        # Bernstein basis, binomials already folded into the weights:
        #   slot (k+1) <- s^k * (1-s)^(degree-k),  k = 0..degree
        if degree == 0:
            lhs_ref[:, seg:2 * seg] = jnp.ones_like(sig).astype(jnp.bfloat16)
        else:
            # pass 1: slot (k+1) <- s^k, k = 1..degree (running product)
            t = sig
            lhs_ref[:, 2 * seg:3 * seg] = t.astype(jnp.bfloat16)
            for k in range(2, degree + 1):
                t = t * sig
                lhs_ref[:, (k + 1) * seg:(k + 2) * seg] = t.astype(jnp.bfloat16)
            # pass 2: slot (k+1) *= (1-s)^(degree-k), k = degree-1..1 (in place)
            q = 1.0 - sig
            for k in range(degree - 1, 0, -1):
                off = (k + 1) * seg
                lhs_ref[:, off:off + seg] = (
                    lhs_ref[:, off:off + seg] * q).astype(jnp.bfloat16)
                q = q * (1.0 - sig)
            # k = 0: basis is (1-s)^degree (s^0 slot written directly)
            lhs_ref[:, seg:2 * seg] = q.astype(jnp.bfloat16)

        # One bf16 MXU matmul per layer (f32 accumulation) replaces degree+2
        # separate K=in_f dots.  Every lane in [0, (d+2)*seg) was just written.
        kdim = (degree + 2) * seg
        x = jnp.dot(lhs_ref[:, :kdim], w, preferred_element_type=jnp.float32)

    o_ref[...] = x.astype(o_ref.dtype)


# ------------------------------ Wrappers ------------------------------------

def _stacked_layer_weight(base_weight, bern_coeffs, degree, in_pad, out_pad):
    """base_weight: (out_f, in_f); bern_coeffs: (in_f, out_f, degree+1).
    Returns bf16 ((degree+2)*in_pad, out_pad) with C(degree,k) folded in (f32),
    zero rows for lane padding and zero cols for output padding."""
    out_f, in_f = base_weight.shape
    binom = jnp.asarray([math.comb(degree, k) for k in range(degree + 1)],
                        jnp.float32)
    coeffs = bern_coeffs.astype(jnp.float32) * binom          # fold C(d,k) in f32
    coeffs = jnp.transpose(coeffs, (2, 0, 1))                 # (d+1, in_f, out_f)
    coeffs = jnp.pad(coeffs, ((0, 0), (0, in_pad - in_f), (0, out_pad - out_f)))
    coeffs = coeffs.reshape((degree + 1) * in_pad, out_pad)
    base = jnp.pad(base_weight.T.astype(jnp.float32),
                   ((0, in_pad - in_f), (0, out_pad - out_f)))
    return jnp.concatenate([base, coeffs], axis=0).astype(jnp.bfloat16)


def _pick_tile_rows(rows, target=256, granule=8):
    """Minimize padding: split rows into ceil(rows/target) near-equal tiles,
    rounded up to the sublane granule (8 for f32, 16 for bf16 activations)."""
    n_steps = max(1, -(-rows // target))
    tile = -(-rows // n_steps)
    return max(granule, _round_up(tile, granule))


def bersnstein_kan_forward(x, params, degree, target_tile_rows=256):
    # TODO(synk): dropout / L1 wrapper layers are identity at the default
    # dropout=0.0, l1_decay=0.0 and are therefore not emitted.
    num_layers = len(params)
    in_f0 = params[0][0].shape[1]
    out_f = params[-1][0].shape[0]

    in_pads = tuple(_round_up(bw.shape[1], 128) for bw, _ in params)
    out_pads = tuple(_round_up(bw.shape[0], 128) for bw, _ in params)
    for li in range(num_layers - 1):             # padded widths must chain
        assert out_pads[li] == in_pads[li + 1]

    ws = [_stacked_layer_weight(bw, bc, degree, in_pads[i], out_pads[i])
          for i, (bw, bc) in enumerate(params)]

    x2d = x.reshape(-1, in_f0)                   # torch.reshape(x, (-1, in))
    rows = x2d.shape[0]
    granule = 16 if x2d.dtype.itemsize == 2 else 8
    tile_rows = _pick_tile_rows(rows, target_tile_rows, granule)
    pad_r = (-rows) % tile_rows
    xp = jnp.pad(x2d, ((0, pad_r), (0, in_pads[0] - in_f0)))
    prows = rows + pad_r

    max_in_pad = max(in_pads)
    out_pad = out_pads[-1]

    in_specs = [pl.BlockSpec((tile_rows, in_pads[0]), lambda i: (i, 0))]
    for w in ws:
        # Full stacked weight VMEM-resident; constant index_map => single DMA.
        # TODO(synk): pipeline_mode=pl.Buffered(1) would halve weight residency;
        # weights here are tiny so the default buffering is kept for safety.
        in_specs.append(pl.BlockSpec(w.shape, lambda i: (0, 0)))

    # Explicit VMEM budget (scoped default: 16 MiB on v5e, 32 MiB on v6e/v7x).
    itemsize = x2d.dtype.itemsize
    need = (2 * tile_rows * in_pads[0] * itemsize          # x, double-buffered
            + 2 * tile_rows * out_pad * itemsize           # out, double-buffered
            + 2 * sum(int(w.size) * 2 for w in ws)         # bf16 weights x2 bufs
            + tile_rows * (degree + 2) * max_in_pad * 2)   # bf16 LHS scratch
    vmem_limit = int(min(max(2 * need, 16 * 2 ** 20), 64 * 2 ** 20))

    out = pl.pallas_call(
        partial(_bkan_fused_kernel, degree=degree, num_layers=num_layers,
                in_pads=in_pads),
        out_shape=jax.ShapeDtypeStruct((prows, out_pad), x.dtype),
        grid_spec=pltpu.PrefetchScalarGridSpec(
            num_scalar_prefetch=0,
            grid=(prows // tile_rows,),
            in_specs=in_specs,
            out_specs=pl.BlockSpec((tile_rows, out_pad), lambda i: (i, 0)),
            scratch_shapes=[
                pltpu.VMEM((tile_rows, (degree + 2) * max_in_pad), jnp.bfloat16),
            ],
        ),
        compiler_params=pltpu.CompilerParams(
            dimension_semantics=("parallel",),
            vmem_limit_bytes=vmem_limit,
        ),
    )(xp, *ws)
    return out[:rows, :out_f]


# ------------------------------ Params init ----------------------------------

def init_bersnstein_kan_params(key, layers_hidden, degree):
    """Matches the PyTorch layer's __init__:
    base_weight: xavier_uniform, shape (out_f, in_f)
    bernstein_coeffs: normal(0, 1/(in_f*(degree+1))), shape (in_f, out_f, degree+1)
    """
    params = []
    for in_f, out_f in zip(layers_hidden[:-1], layers_hidden[1:]):
        key, k1, k2 = jax.random.split(key, 3)
        bound = math.sqrt(6.0 / (in_f + out_f))
        base_weight = jax.random.uniform(k1, (out_f, in_f), jnp.float32, -bound, bound)
        std = 1.0 / (in_f * (degree + 1))
        bern_coeffs = jax.random.normal(k2, (in_f, out_f, degree + 1), jnp.float32) * std
        params.append((base_weight, bern_coeffs))
    return params


# --------------------------- pure-JAX reference ------------------------------

def _ref_forward(x, params, degree):
    for base_weight, bern_coeffs in params:
        in_f = base_weight.shape[1]
        x = x.reshape(-1, in_f).astype(jnp.float32)
        sig = jax.nn.sigmoid(x)
        base = (x * sig) @ base_weight.T
        basis = jnp.stack(
            [math.comb(degree, k) * sig ** k * (1.0 - sig) ** (degree - k)
             for k in range(degree + 1)], axis=-1)           # (rows, in, d+1)
        y = jnp.einsum("bid,iod->bo", basis, bern_coeffs)
        x = base + y
    return x


# --------------------------------- main --------------------------------------

if __name__ == "__main__":
    layers_hidden = [32, 64, 16]
    degree = 3

    key = jax.random.PRNGKey(0)
    key_x, key_p = jax.random.split(key)
    x = jax.random.normal(key_x, (2, 8, layers_hidden[0]), jnp.float32)

    params = init_bersnstein_kan_params(key_p, layers_hidden, degree)

    out = bersnstein_kan_forward(x, params, degree)
    out = jax.block_until_ready(out)
    ref = _ref_forward(x, params, degree)
    assert out.shape == (2 * 8, layers_hidden[-1]), out.shape
    # bf16 MXU operands + approx reciprocal -> compare to the f32 reference at
    # bf16-appropriate tolerance.
    assert jnp.allclose(out, ref, atol=2e-2, rtol=2e-2), "mismatch vs JAX reference"

    # Second check with amplified Bernstein coefficients so the polynomial
    # branch dominates (more sensitive to basis/slot layout bugs).
    params_big = [(bw, bc * 20.0) for (bw, bc) in params]
    out2 = jax.block_until_ready(bersnstein_kan_forward(x, params_big, degree))
    ref2 = _ref_forward(x, params_big, degree)
    assert jnp.allclose(out2, ref2, atol=2e-2, rtol=2e-2), "mismatch (scaled coeffs)"

    print("KERNEL_OK")
</pallas_src>

<mosaic_0001>
module attributes {stable_mosaic.version = 11 : i64} {
  func.func @_bkan_fused_kernel(%arg0: i32, %arg1: memref<16x128xf32, #tpu.memory_space<vmem>>, %arg2: memref<640x128xbf16, #tpu.memory_space<vmem>>, %arg3: memref<640x128xbf16, #tpu.memory_space<vmem>>, %arg4: memref<16x128xf32, #tpu.memory_space<vmem>>, %arg5: memref<16x640xbf16, #tpu.memory_space<vmem>>) attributes {dimension_semantics = [#tpu.dimension_semantics<parallel>], iteration_bounds = array<i64: 1>, scalar_prefetch = 0 : i64, scratch_operands = 1 : i64, tpu.core_type = #tpu.core_type<tc>, window_params = [{transform_indices = @transform_0, window_bounds = array<i64: 16, 128>}, {pipeline_mode = #tpu.pipeline_mode<synchronous>, transform_indices = @transform_1, window_bounds = array<i64: 640, 128>}, {pipeline_mode = #tpu.pipeline_mode<synchronous>, transform_indices = @transform_2, window_bounds = array<i64: 640, 128>}, {transform_indices = @transform_3, window_bounds = array<i64: 16, 128>}]} {
    %c0 = arith.constant 0 : index
    %c0_0 = arith.constant 0 : index
    %0 = vector.load %arg1[%c0, %c0_0] : memref<16x128xf32, #tpu.memory_space<vmem>>, vector<16x128xf32>
    %c0_1 = arith.constant 0 : index
    %c0_2 = arith.constant 0 : index
    %1 = vector.load %arg2[%c0_1, %c0_2] : memref<640x128xbf16, #tpu.memory_space<vmem>>, vector<640x128xbf16>
    %cst = arith.constant 0.000000e+00 : f32
    %2 = vector.broadcast %cst : f32 to vector<16x128xf32>
    %3 = arith.subf %2, %0 : vector<16x128xf32>
    %4 = math.exp %3 : vector<16x128xf32>
    %cst_3 = arith.constant 1.000000e+00 : f32
    %5 = vector.broadcast %cst_3 : f32 to vector<16x128xf32>
    %6 = arith.addf %5, %4 : vector<16x128xf32>
    %7 = tpu.reciprocal %6 {approx = true} : vector<16x128xf32> -> vector<16x128xf32>
    %8 = arith.mulf %0, %7 : vector<16x128xf32>
    %9 = arith.truncf %8 : vector<16x128xf32> to vector<16x128xbf16>
    %c0_4 = arith.constant 0 : index
    %c0_5 = arith.constant 0 : index
    %10 = vector.load %arg5[%c0_4, %c0_5] : memref<16x640xbf16, #tpu.memory_space<vmem>>, vector<16x128xbf16>
    tpu.vector_store %arg5[%c0_4, %c0_5], %9 {strides = array<i32>} : memref<16x640xbf16, #tpu.memory_space<vmem>>, vector<16x128xbf16>,
    %11 = arith.truncf %7 : vector<16x128xf32> to vector<16x128xbf16>
    %c0_6 = arith.constant 0 : index
    %c256 = arith.constant 256 : index
    %12 = vector.load %arg5[%c0_6, %c256] : memref<16x640xbf16, #tpu.memory_space<vmem>>, vector<16x128xbf16>
    tpu.vector_store %arg5[%c0_6, %c256], %11 {strides = array<i32>} : memref<16x640xbf16, #tpu.memory_space<vmem>>, vector<16x128xbf16>,
    %13 = arith.mulf %7, %7 : vector<16x128xf32>
    %14 = arith.truncf %13 : vector<16x128xf32> to vector<16x128xbf16>
    %c0_7 = arith.constant 0 : index
    %c384 = arith.constant 384 : index
    %15 = vector.load %arg5[%c0_7, %c384] : memref<16x640xbf16, #tpu.memory_space<vmem>>, vector<16x128xbf16>
    tpu.vector_store %arg5[%c0_7, %c384], %14 {strides = array<i32>} : memref<16x640xbf16, #tpu.memory_space<vmem>>, vector<16x128xbf16>,
    %16 = arith.mulf %13, %7 : vector<16x128xf32>
    %17 = arith.truncf %16 : vector<16x128xf32> to vector<16x128xbf16>
    %c0_8 = arith.constant 0 : index
    %c512 = arith.constant 512 : index
    %18 = vector.load %arg5[%c0_8, %c512] : memref<16x640xbf16, #tpu.memory_space<vmem>>, vector<16x128xbf16>
    tpu.vector_store %arg5[%c0_8, %c512], %17 {strides = array<i32>} : memref<16x640xbf16, #tpu.memory_space<vmem>>, vector<16x128xbf16>,
    %cst_9 = arith.constant 1.000000e+00 : f32
    %19 = vector.broadcast %cst_9 : f32 to vector<16x128xf32>
    %20 = arith.subf %19, %7 : vector<16x128xf32>
    %c0_10 = arith.constant 0 : index
    %c384_11 = arith.constant 384 : index
    %21 = vector.load %arg5[%c0_10, %c384_11] : memref<16x640xbf16, #tpu.memory_space<vmem>>, vector<16x128xbf16>
    %22 = arith.extf %21 : vector<16x128xbf16> to vector<16x128xf32>
    %23 = arith.mulf %22, %20 : vector<16x128xf32>
    %24 = arith.truncf %23 : vector<16x128xf32> to vector<16x128xbf16>
    %c0_12 = arith.constant 0 : index
    %c384_13 = arith.constant 384 : index
    %25 = vector.load %arg5[%c0_12, %c384_13] : memref<16x640xbf16, #tpu.memory_space<vmem>>, vector<16x128xbf16>
    tpu.vector_store %arg5[%c0_12, %c384_13], %24 {strides = array<i32>} : memref<16x640xbf16, #tpu.memory_space<vmem>>, vector<16x128xbf16>,
    %cst_14 = arith.constant 1.000000e+00 : f32
    %26 = vector.broadcast %cst_14 : f32 to vector<16x128xf32>
    %27 = arith.subf %26, %7 : vector<16x128xf32>
    %28 = arith.mulf %20, %27 : vector<16x128xf32>
    %c0_15 = arith.constant 0 : index
    %c256_16 = arith.constant 256 : index
    %29 = vector.load %arg5[%c0_15, %c256_16] : memref<16x640xbf16, #tpu.memory_space<vmem>>, vector<16x128xbf16>
    %30 = arith.extf %29 : vector<16x128xbf16> to vector<16x128xf32>
    %31 = arith.mulf %30, %28 : vector<16x128xf32>
    %32 = arith.truncf %31 : vector<16x128xf32> to vector<16x128xbf16>
    %c0_17 = arith.constant 0 : index
    %c256_18 = arith.constant 256 : index
    %33 = vector.load %arg5[%c0_17, %c256_18] : memref<16x640xbf16, #tpu.memory_space<vmem>>, vector<16x128xbf16>
    tpu.vector_store %arg5[%c0_17, %c256_18], %32 {strides = array<i32>} : memref<16x640xbf16, #tpu.memory_space<vmem>>, vector<16x128xbf16>,
    %cst_19 = arith.constant 1.000000e+00 : f32
    %34 = vector.broadcast %cst_19 : f32 to vector<16x128xf32>
    %35 = arith.subf %34, %7 : vector<16x128xf32>
    %36 = arith.mulf %28, %35 : vector<16x128xf32>
    %37 = arith.truncf %36 : vector<16x128xf32> to vector<16x128xbf16>
    %c0_20 = arith.constant 0 : index
    %c128 = arith.constant 128 : index
    %38 = vector.load %arg5[%c0_20, %c128] : memref<16x640xbf16, #tpu.memory_space<vmem>>, vector<16x128xbf16>
    tpu.vector_store %arg5[%c0_20, %c128], %37 {strides = array<i32>} : memref<16x640xbf16, #tpu.memory_space<vmem>>, vector<16x128xbf16>,
    %c0_21 = arith.constant 0 : index
    %c0_22 = arith.constant 0 : index
    %39 = vector.load %arg5[%c0_21, %c0_22] : memref<16x640xbf16, #tpu.memory_space<vmem>>, vector<16x640xbf16>
    %cst_23 = arith.constant dense<0.000000e+00> : vector<16x128xf32>
    %40 = tpu.matmul %39, %1, %cst_23 {dimension_numbers = #tpu.dot_dimension_numbers<[1], [0], [0], [1], [0, 0, 1, 1], [], []>} : vector<16x640xbf16>, vector<640x128xbf16>, vector<16x128xf32> -> vector<16x128xf32>
    %c0_24 = arith.constant 0 : index
    %c0_25 = arith.constant 0 : index
    %41 = vector.load %arg3[%c0_24, %c0_25] : memref<640x128xbf16, #tpu.memory_space<vmem>>, vector<640x128xbf16>
    %cst_26 = arith.constant 0.000000e+00 : f32
    %42 = vector.broadcast %cst_26 : f32 to vector<16x128xf32>
    %43 = arith.subf %42, %40 : vector<16x128xf32>
    %44 = math.exp %43 : vector<16x128xf32>
    %cst_27 = arith.constant 1.000000e+00 : f32
    %45 = vector.broadcast %cst_27 : f32 to vector<16x128xf32>
    %46 = arith.addf %45, %44 : vector<16x128xf32>
    %47 = tpu.reciprocal %46 {approx = true} : vector<16x128xf32> -> vector<16x128xf32>
    %48 = arith.mulf %40, %47 : vector<16x128xf32>
    %49 = arith.truncf %48 : vector<16x128xf32> to vector<16x128xbf16>
    %c0_28 = arith.constant 0 : index
    %c0_29 = arith.constant 0 : index
    %50 = vector.load %arg5[%c0_28, %c0_29] : memref<16x640xbf16, #tpu.memory_space<vmem>>, vector<16x128xbf16>
    tpu.vector_store %arg5[%c0_28, %c0_29], %49 {strides = array<i32>} : memref<16x640xbf16, #tpu.memory_space<vmem>>, vector<16x128xbf16>,
    %51 = arith.truncf %47 : vector<16x128xf32> to vector<16x128xbf16>
    %c0_30 = arith.constant 0 : index
    %c256_31 = arith.constant 256 : index
    %52 = vector.load %arg5[%c0_30, %c256_31] : memref<16x640xbf16, #tpu.memory_space<vmem>>, vector<16x128xbf16>
    tpu.vector_store %arg5[%c0_30, %c256_31], %51 {strides = array<i32>} : memref<16x640xbf16, #tpu.memory_space<vmem>>, vector<16x128xbf16>,
    %53 = arith.mulf %47, %47 : vector<16x128xf32>
    %54 = arith.truncf %53 : vector<16x128xf32> to vector<16x128xbf16>
    %c0_32 = arith.constant 0 : index
    %c384_33 = arith.constant 384 : index
    %55 = vector.load %arg5[%c0_32, %c384_33] : memref<16x640xbf16, #tpu.memory_space<vmem>>, vector<16x128xbf16>
    tpu.vector_store %arg5[%c0_32, %c384_33], %54 {strides = array<i32>} : memref<16x640xbf16, #tpu.memory_space<vmem>>, vector<16x128xbf16>,
    %56 = arith.mulf %53, %47 : vector<16x128xf32>
    %57 = arith.truncf %56 : vector<16x128xf32> to vector<16x128xbf16>
    %c0_34 = arith.constant 0 : index
    %c512_35 = arith.constant 512 : index
    %58 = vector.load %arg5[%c0_34, %c512_35] : memref<16x640xbf16, #tpu.memory_space<vmem>>, vector<16x128xbf16>
    tpu.vector_store %arg5[%c0_34, %c512_35], %57 {strides = array<i32>} : memref<16x640xbf16, #tpu.memory_space<vmem>>, vector<16x128xbf16>,
    %cst_36 = arith.constant 1.000000e+00 : f32
    %59 = vector.broadcast %cst_36 : f32 to vector<16x128xf32>
    %60 = arith.subf %59, %47 : vector<16x128xf32>
    %c0_37 = arith.constant 0 : index
    %c384_38 = arith.constant 384 : index
    %61 = vector.load %arg5[%c0_37, %c384_38] : memref<16x640xbf16, #tpu.memory_space<vmem>>, vector<16x128xbf16>
    %62 = arith.extf %61 : vector<16x128xbf16> to vector<16x128xf32>
    %63 = arith.mulf %62, %60 : vector<16x128xf32>
    %64 = arith.truncf %63 : vector<16x128xf32> to vector<16x128xbf16>
    %c0_39 = arith.constant 0 : index
    %c384_40 = arith.constant 384 : index
    %65 = vector.load %arg5[%c0_39, %c384_40] : memref<16x640xbf16, #tpu.memory_space<vmem>>, vector<16x128xbf16>
    tpu.vector_store %arg5[%c0_39, %c384_40], %64 {strides = array<i32>} : memref<16x640xbf16, #tpu.memory_space<vmem>>, vector<16x128xbf16>,
    %cst_41 = arith.constant 1.000000e+00 : f32
    %66 = vector.broadcast %cst_41 : f32 to vector<16x128xf32>
    %67 = arith.subf %66, %47 : vector<16x128xf32>
    %68 = arith.mulf %60, %67 : vector<16x128xf32>
    %c0_42 = arith.constant 0 : index
    %c256_43 = arith.constant 256 : index
    %69 = vector.load %arg5[%c0_42, %c256_43] : memref<16x640xbf16, #tpu.memory_space<vmem>>, vector<16x128xbf16>
    %70 = arith.extf %69 : vector<16x128xbf16> to vector<16x128xf32>
    %71 = arith.mulf %70, %68 : vector<16x128xf32>
    %72 = arith.truncf %71 : vector<16x128xf32> to vector<16x128xbf16>
    %c0_44 = arith.constant 0 : index
    %c256_45 = arith.constant 256 : index
    %73 = vector.load %arg5[%c0_44, %c256_45] : memref<16x640xbf16, #tpu.memory_space<vmem>>, vector<16x128xbf16>
    tpu.vector_store %arg5[%c0_44, %c256_45], %72 {strides = array<i32>} : memref<16x640xbf16, #tpu.memory_space<vmem>>, vector<16x128xbf16>,
    %cst_46 = arith.constant 1.000000e+00 : f32
    %74 = vector.broadcast %cst_46 : f32 to vector<16x128xf32>
    %75 = arith.subf %74, %47 : vector<16x128xf32>
    %76 = arith.mulf %68, %75 : vector<16x128xf32>
    %77 = arith.truncf %76 : vector<16x128xf32> to vector<16x128xbf16>
    %c0_47 = arith.constant 0 : index
    %c128_48 = arith.constant 128 : index
    %78 = vector.load %arg5[%c0_47, %c128_48] : memref<16x640xbf16, #tpu.memory_space<vmem>>, vector<16x128xbf16>
    tpu.vector_store %arg5[%c0_47, %c128_48], %77 {strides = array<i32>} : memref<16x640xbf16, #tpu.memory_space<vmem>>, vector<16x128xbf16>,
    %c0_49 = arith.constant 0 : index
    %c0_50 = arith.constant 0 : index
    %79 = vector.load %arg5[%c0_49, %c0_50] : memref<16x640xbf16, #tpu.memory_space<vmem>>, vector<16x640xbf16>
    %cst_51 = arith.constant dense<0.000000e+00> : vector<16x128xf32>
    %80 = tpu.matmul %79, %41, %cst_51 {dimension_numbers = #tpu.dot_dimension_numbers<[1], [0], [0], [1], [0, 0, 1, 1], [], []>} : vector<16x640xbf16>, vector<640x128xbf16>, vector<16x128xf32> -> vector<16x128xf32>
    %c0_52 = arith.constant 0 : index
    %c0_53 = arith.constant 0 : index
    %81 = vector.load %arg4[%c0_52, %c0_53] : memref<16x128xf32, #tpu.memory_space<vmem>>, vector<16x128xf32>
    tpu.vector_store %arg4[%c0_52, %c0_53], %80 {strides = array<i32>} : memref<16x128xf32, #tpu.memory_space<vmem>>, vector<16x128xf32>,
    return
  }
  func.func @transform_0(%arg0: i32) -> (i32, i32) {
    %c0_i32 = arith.constant 0 : i32
    %c0_i32_0 = arith.constant 0 : i32
    return %arg0, %c0_i32 : i32, i32
  }
  func.func @transform_1(%arg0: i32) -> (i32, i32) {
    %c0_i32 = arith.constant 0 : i32
    %c0_i32_0 = arith.constant 0 : i32
    %c0_i32_1 = arith.constant 0 : i32
    return %c0_i32, %c0_i32_0 : i32, i32
  }
  func.func @transform_2(%arg0: i32) -> (i32, i32) {
    %c0_i32 = arith.constant 0 : i32
    %c0_i32_0 = arith.constant 0 : i32
    %c0_i32_1 = arith.constant 0 : i32
    return %c0_i32, %c0_i32_0 : i32, i32
  }
  func.func @transform_3(%arg0: i32) -> (i32, i32) {
    %c0_i32 = arith.constant 0 : i32
    %c0_i32_0 = arith.constant 0 : i32
    return %arg0, %c0_i32 : i32, i32
  }
}

</mosaic_0001>

<llo_original>
// kernel: tpu_custom_call.1
$region0: #{tpu_custom_call.1}
  #allocation0 [shape = 'u32[]', space=smem, size = 0x4, offset = 0x4, fixed_abs, tag = 'smem constant byte address 0x4 - core index']
  #allocation1 [shape = 'u32[144,128]{1,0:T(1,128)}', space=vmem, size = 0x12000, scoped, tag = 'internal scratch']
  #allocation2 [shape = 'bf16[16,640]{1,0:T(8,128)(2,1)}', space=vmem, size = 0x5000, scoped, tag = 'scratch operand']
  %s0 = inlined_call_operand.hbm [shape: f32[16,128], index: 0, kind: input, shape index: {}]
  %s1 = inlined_call_operand.hbm [shape: bf16[640,128], index: 1, kind: input, shape index: {}]
  %s2 = inlined_call_operand.hbm [shape: bf16[640,128], index: 2, kind: input, shape index: {}]
  %s3 = inlined_call_operand.hbm [shape: f32[16,128], index: 3, kind: output, shape index: {}]
  %s4 = sld [smem:[#allocation0]]
  $region34: #{tpu_custom_call.1} parent=0
    _
  %s6 = ssub.s32 1, %s4
  %s7 = scalar_select 0, %s6, %s4
  $region1: #{tpu_custom_call.1} parent=0
    #allocation3 [shape = 'u8[8192]{0}', space=vmem, size = 0x2000, scoped, tag = 'input window, operand 0, single buffered']
    #allocation4 [shape = 's32[1]{0}', space=sflag, size = 0x4, scoped, tag = 'scoped memory for tpu_custom_call.1']
    #allocation5 [shape = 's32[1]{0}', space=sflag, size = 0x4, scoped, tag = 'scoped memory for tpu_custom_call.1']
    #allocation6 [shape = 'u8[163840]{0}', space=vmem, size = 0x28000, scoped, tag = 'input window, operand 1, single buffered']
    #allocation7 [shape = 's32[1]{0}', space=sflag, size = 0x4, scoped, tag = 'scoped memory for tpu_custom_call.1']
    #allocation8 [shape = 'u8[163840]{0}', space=vmem, size = 0x28000, scoped, tag = 'input window, operand 2, single buffered']
    #allocation9 [shape = 'u8[8192]{0}', space=vmem, size = 0x2000, scoped, tag = 'output window, operand 0, single buffered']
    %8 = vsyncpa [#allocation4], 0
    %9 = vsyncpa [#allocation7], 0
    %10 = vsyncpa [#allocation5], 0
    // Predicated region
    $region2: #{tpu_custom_call.1} parent=1 // pred_check
      _
    $region3: #{tpu_custom_call.1} parent=1 // pred_check_branch
      %12 = sbr.rel (0) target = $region5
    $region4: #{tpu_custom_call.1} parent=1 // pred_region
      %s14 = ssub.s32 256, 256
      %15 = vsyncadd [#allocation4], %s14
      %s16 = sshll.u32 [#allocation3], 4
      %s17 = int_to_ptr.vmem [resolvable:$true] %s16
      %22 = dma.hbm_to_vmem [thread:$0]  %s0, 256, %s17, [#allocation4], 128, 128, 8
    $region5: #{tpu_custom_call.1} parent=1 // pred_fallthru
      _
    // Predicated region
    $region6: #{tpu_custom_call.1} parent=1 // pred_check
      _
    $region7: #{tpu_custom_call.1} parent=1 // pred_check_branch
      %24 = sbr.rel (0) target = $region9
    $region8: #{tpu_custom_call.1} parent=1 // pred_region
      %s26 = ssub.s32 5120, 5120
      %27 = vsyncadd [#allocation7], %s26
      %s28 = sshll.u32 [#allocation6], 4
      %s29 = int_to_ptr.vmem [resolvable:$true] %s28
      %34 = dma.hbm_to_vmem [thread:$0]  %s1, 5120, %s29, [#allocation7], 64, 64, 4
    $region9: #{tpu_custom_call.1} parent=1 // pred_fallthru
      _
    // Predicated region
    $region10: #{tpu_custom_call.1} parent=1 // pred_check
      _
    $region11: #{tpu_custom_call.1} parent=1 // pred_check_branch
      %36 = sbr.rel (0) target = $region13
    $region12: #{tpu_custom_call.1} parent=1 // pred_region
      %s38 = ssub.s32 5120, 5120
      %39 = vsyncadd [#allocation7], %s38
      %s40 = sshll.u32 [#allocation8], 4
      %s41 = int_to_ptr.vmem [resolvable:$true] %s40
      %46 = dma.hbm_to_vmem [thread:$0]  %s2, 5120, %s41, [#allocation7], 64, 64, 4
    $region13: #{tpu_custom_call.1} parent=1 // pred_fallthru
      _
    // Predicated region
    $region14: #{tpu_custom_call.1} parent=1 // pred_check
      _
    $region15: #{tpu_custom_call.1} parent=1 // pred_check_branch
      %48 = sbr.rel (0) target = $region17
    $region16: #{tpu_custom_call.1} parent=1 // pred_region
      %49 = dma.done [#allocation4], 256
    $region17: #{tpu_custom_call.1} parent=1 // pred_fallthru
      _
    // Predicated region
    $region18: #{tpu_custom_call.1} parent=1 // pred_check
      _
    $region19: #{tpu_custom_call.1} parent=1 // pred_check_branch
      %51 = sbr.rel (0) target = $region21
    $region20: #{tpu_custom_call.1} parent=1 // pred_region
      %52 = dma.done [#allocation7], 5120
    $region21: #{tpu_custom_call.1} parent=1 // pred_fallthru
      _
    // Predicated region
    $region22: #{tpu_custom_call.1} parent=1 // pred_check
      _
    $region23: #{tpu_custom_call.1} parent=1 // pred_check_branch
      %54 = sbr.rel (0) target = $region25
    $region24: #{tpu_custom_call.1} parent=1 // pred_region
      %55 = dma.done [#allocation7], 5120
    $region25: #{tpu_custom_call.1} parent=1 // pred_fallthru
      _
    %v57 = vld [vmem:[#allocation3] sm:$0xff]
    %v58 = vld [vmem:[#allocation3 + $0x8] sm:$0xff]
    %v59 = vld [vmem:[#allocation6] sm:$0xf]
    %v60 = vld [vmem:[#allocation6 + $0x4] sm:$0xf]
    %v61 = vld [vmem:[#allocation6 + $0x8] sm:$0xf]
    %v62 = vld [vmem:[#allocation6 + $0xc] sm:$0xf]
    %v63 = vld [vmem:[#allocation6 + $0x10] sm:$0xf]
    %v64 = vld [vmem:[#allocation6 + $0x14] sm:$0xf]
    %v65 = vld [vmem:[#allocation6 + $0x18] sm:$0xf]
    %v66 = vld [vmem:[#allocation6 + $0x1c] sm:$0xf]
    %v67 = vld [vmem:[#allocation6 + $0x20] sm:$0xf]
    %v68 = vld [vmem:[#allocation6 + $0x24] sm:$0xf]
    %v69 = vld [vmem:[#allocation6 + $0x28] sm:$0xf]
    %v70 = vld [vmem:[#allocation6 + $0x2c] sm:$0xf]
    %v71 = vld [vmem:[#allocation6 + $0x30] sm:$0xf]
    %v72 = vld [vmem:[#allocation6 + $0x34] sm:$0xf]
    %v73 = vld [vmem:[#allocation6 + $0x38] sm:$0xf]
    %v74 = vld [vmem:[#allocation6 + $0x3c] sm:$0xf]
    %v75 = vld [vmem:[#allocation6 + $0x40] sm:$0xf]
    %v76 = vld [vmem:[#allocation6 + $0x44] sm:$0xf]
    %v77 = vld [vmem:[#allocation6 + $0x48] sm:$0xf]
    %v78 = vld [vmem:[#allocation6 + $0x4c] sm:$0xf]
    %v79 = vld [vmem:[#allocation6 + $0x50] sm:$0xf]
    %v80 = vld [vmem:[#allocation6 + $0x54] sm:$0xf]
    %v81 = vld [vmem:[#allocation6 + $0x58] sm:$0xf]
    %v82 = vld [vmem:[#allocation6 + $0x5c] sm:$0xf]
    %v83 = vld [vmem:[#allocation6 + $0x60] sm:$0xf]
    %v84 = vld [vmem:[#allocation6 + $0x64] sm:$0xf]
    %v85 = vld [vmem:[#allocation6 + $0x68] sm:$0xf]
    %v86 = vld [vmem:[#allocation6 + $0x6c] sm:$0xf]
    %v87 = vld [vmem:[#allocation6 + $0x70] sm:$0xf]
    %v88 = vld [vmem:[#allocation6 + $0x74] sm:$0xf]
    %v89 = vld [vmem:[#allocation6 + $0x78] sm:$0xf]
    %v90 = vld [vmem:[#allocation6 + $0x7c] sm:$0xf]
    %v91 = vld [vmem:[#allocation6 + $0x80] sm:$0xf]
    %v92 = vld [vmem:[#allocation6 + $0x84] sm:$0xf]
    %v93 = vld [vmem:[#allocation6 + $0x88] sm:$0xf]
    %v94 = vld [vmem:[#allocation6 + $0x8c] sm:$0xf]
    %v95 = vld [vmem:[#allocation6 + $0x90] sm:$0xf]
    %v96 = vld [vmem:[#allocation6 + $0x94] sm:$0xf]
    %v97 = vld [vmem:[#allocation6 + $0x98] sm:$0xf]
    %v98 = vld [vmem:[#allocation6 + $0x9c] sm:$0xf]
    %v99 = vld [vmem:[#allocation6 + $0xa0] sm:$0xf]
    %v100 = vld [vmem:[#allocation6 + $0xa4] sm:$0xf]
    %v101 = vld [vmem:[#allocation6 + $0xa8] sm:$0xf]
    %v102 = vld [vmem:[#allocation6 + $0xac] sm:$0xf]
    %v103 = vld [vmem:[#allocation6 + $0xb0] sm:$0xf]
    %v104 = vld [vmem:[#allocation6 + $0xb4] sm:$0xf]
    %v105 = vld [vmem:[#allocation6 + $0xb8] sm:$0xf]
    %v106 = vld [vmem:[#allocation6 + $0xbc] sm:$0xf]
    %v107 = vld [vmem:[#allocation6 + $0xc0] sm:$0xf]
    %v108 = vld [vmem:[#allocation6 + $0xc4] sm:$0xf]
    %v109 = vld [vmem:[#allocation6 + $0xc8] sm:$0xf]
    %v110 = vld [vmem:[#allocation6 + $0xcc] sm:$0xf]
    %v111 = vld [vmem:[#allocation6 + $0xd0] sm:$0xf]
    %v112 = vld [vmem:[#allocation6 + $0xd4] sm:$0xf]
    %v113 = vld [vmem:[#allocation6 + $0xd8] sm:$0xf]
    %v114 = vld [vmem:[#allocation6 + $0xdc] sm:$0xf]
    %v115 = vld [vmem:[#allocation6 + $0xe0] sm:$0xf]
    %v116 = vld [vmem:[#allocation6 + $0xe4] sm:$0xf]
    %v117 = vld [vmem:[#allocation6 + $0xe8] sm:$0xf]
    %v118 = vld [vmem:[#allocation6 + $0xec] sm:$0xf]
    %v119 = vld [vmem:[#allocation6 + $0xf0] sm:$0xf]
    %v120 = vld [vmem:[#allocation6 + $0xf4] sm:$0xf]
    %v121 = vld [vmem:[#allocation6 + $0xf8] sm:$0xf]
    %v122 = vld [vmem:[#allocation6 + $0xfc] sm:$0xf]
    %v123 = vld [vmem:[#allocation6 + $0x100] sm:$0xf]
    %v124 = vld [vmem:[#allocation6 + $0x104] sm:$0xf]
    %v125 = vld [vmem:[#allocation6 + $0x108] sm:$0xf]
    %v126 = vld [vmem:[#allocation6 + $0x10c] sm:$0xf]
    %v127 = vld [vmem:[#allocation6 + $0x110] sm:$0xf]
    %v128 = vld [vmem:[#allocation6 + $0x114] sm:$0xf]
    %v129 = vld [vmem:[#allocation6 + $0x118] sm:$0xf]
    %v130 = vld [vmem:[#allocation6 + $0x11c] sm:$0xf]
    %v131 = vld [vmem:[#allocation6 + $0x120] sm:$0xf]
    %v132 = vld [vmem:[#allocation6 + $0x124] sm:$0xf]
    %v133 = vld [vmem:[#allocation6 + $0x128] sm:$0xf]
    %v134 = vld [vmem:[#allocation6 + $0x12c] sm:$0xf]
    %v135 = vld [vmem:[#allocation6 + $0x130] sm:$0xf]
    %v136 = vld [vmem:[#allocation6 + $0x134] sm:$0xf]
    %v137 = vld [vmem:[#allocation6 + $0x138] sm:$0xf]
    %v138 = vld [vmem:[#allocation6 + $0x13c] sm:$0xf]
    %v139 = vsub.f32 0.0, %v57
    %v140 = vsub.f32 0.0, %v58
    %v141 = vmul.f32 %v139, 1.442695
    %v142 = vpow.pop %v141
    %v143 = vmul.f32 %v140, 1.442695
    %v144 = vpow.pop %v143
    %v145 = vadd.f32 %v142, 1.0
    %v146 = vadd.f32 %v144, 1.0
    %v147 = vrcp.pop %v145
    %v148 = vrcp.pop %v146
    %v149 = vmul.f32 %v57, %v147
    %v150 = vmul.f32 %v58, %v148
    %v151 = vpack.c.bf16 %v150, %v149
    %v153 = vunpack.c.l.b16 %v151
    %v154 = vunpack.c.h.b16 %v151
    %v155 = vpack.c.b16 %v153, %v153
    %v156 = vpack.c.b16 %v154, %v154
    %159 = vst [vmem:[#allocation2] sm:$0xf] %v155
    %160 = vst [vmem:[#allocation2 + $0x14] sm:$0xf] %v156
    %v161 = vpack.c.bf16 %v148, %v147
    %v163 = vunpack.c.l.b16 %v161
    %v164 = vunpack.c.h.b16 %v161
    %v165 = vpack.c.b16 %v163, %v163
    %v166 = vpack.c.b16 %v164, %v164
    %169 = vst [vmem:[#allocation2 + $0x8] sm:$0xf] %v165
    %170 = vst [vmem:[#allocation2 + $0x1c] sm:$0xf] %v166
    %v171 = vmul.f32 %v147, %v147
    %v172 = vmul.f32 %v148, %v148
    %v173 = vpack.c.bf16 %v172, %v171
    %v175 = vunpack.c.l.b16 %v173
    %v176 = vunpack.c.h.b16 %v173
    %v177 = vpack.c.b16 %v175, %v175
    %v178 = vpack.c.b16 %v176, %v176
    %181 = vst [vmem:[#allocation2 + $0xc] sm:$0xf] %v177
    %182 = vst [vmem:[#allocation2 + $0x20] sm:$0xf] %v178
    %v183 = vmul.f32 %v171, %v147
    %v184 = vmul.f32 %v172, %v148
    %v185 = vpack.c.bf16 %v184, %v183
    %v187 = vunpack.c.l.b16 %v185
    %v188 = vunpack.c.h.b16 %v185
    %v189 = vpack.c.b16 %v187, %v187
    %v190 = vpack.c.b16 %v188, %v188
    %193 = vst [vmem:[#allocation2 + $0x10] sm:$0xf] %v189
    %194 = vst [vmem:[#allocation2 + $0x24] sm:$0xf] %v190
    %v195 = vsub.f32 1.0, %v147
    %v196 = vsub.f32 1.0, %v148
    %v197 = vld [vmem:[#allocation2 + $0xc] sm:$0xf]
    %v198 = vld [vmem:[#allocation2 + $0x20] sm:$0xf]
    %v199 = vunpack.c.l.bf16 %v197
    %v200 = vunpack.c.l.bf16 %v198
    %v201 = vmul.f32 %v199, %v195
    %v202 = vmul.f32 %v200, %v196
    %v203 = vpack.c.bf16 %v202, %v201
    %v205 = vunpack.c.l.b16 %v203
    %v206 = vunpack.c.h.b16 %v203
    %v207 = vpack.c.b16 %v205, %v205
    %v208 = vpack.c.b16 %v206, %v206
    %211 = vst [vmem:[#allocation2 + $0xc] sm:$0xf] %v207
    %212 = vst [vmem:[#allocation2 + $0x20] sm:$0xf] %v208
    %v213 = vmul.f32 %v195, %v195
    %v214 = vmul.f32 %v196, %v196
    %v215 = vld [vmem:[#allocation2 + $0x8] sm:$0xf]
    %v216 = vld [vmem:[#allocation2 + $0x1c] sm:$0xf]
    %v217 = vunpack.c.l.bf16 %v215
    %v218 = vunpack.c.l.bf16 %v216
    %v219 = vmul.f32 %v217, %v213
    %v220 = vmul.f32 %v218, %v214
    %v221 = vpack.c.bf16 %v220, %v219
    %v223 = vunpack.c.l.b16 %v221
    %v224 = vunpack.c.h.b16 %v221
    %v225 = vpack.c.b16 %v223, %v223
    %v226 = vpack.c.b16 %v224, %v224
    %229 = vst [vmem:[#allocation2 + $0x8] sm:$0xf] %v225
    %230 = vst [vmem:[#allocation2 + $0x1c] sm:$0xf] %v226
    %v231 = vmul.f32 %v213, %v195
    %v232 = vmul.f32 %v214, %v196
    %v233 = vpack.c.bf16 %v232, %v231
    %v235 = vunpack.c.l.b16 %v233
    %v236 = vunpack.c.h.b16 %v233
    %v237 = vpack.c.b16 %v235, %v235
    %v238 = vpack.c.b16 %v236, %v236
    %241 = vst [vmem:[#allocation2 + $0x4] sm:$0xf] %v237
    %242 = vst [vmem:[#allocation2 + $0x18] sm:$0xf] %v238
    %v243 = vld [vmem:[#allocation2] sm:$0xff]
    %v244 = vld [vmem:[#allocation2 + $0x8] sm:$0xff]
    %v245 = vld [vmem:[#allocation2 + $0x10] sm:$0xf]
    %v246 = vld [vmem:[#allocation2 + $0x14] sm:$0xff]
    %v247 = vld [vmem:[#allocation2 + $0x1c] sm:$0xff]
    %v248 = vld [vmem:[#allocation2 + $0x24] sm:$0xf]
    %v255 = vunpack.c.l.b16 %v243
    %v256 = vunpack.c.h.b16 %v243
    %v257 = vunpack.c.l.b16 %v244
    %v258 = vunpack.c.h.b16 %v244
    %v259 = vunpack.c.l.b16 %v245
    %v260 = vunpack.c.l.b16 %v246
    %v261 = vunpack.c.h.b16 %v246
    %v262 = vunpack.c.l.b16 %v247
    %v263 = vunpack.c.h.b16 %v247
    %v264 = vunpack.c.l.b16 %v248
    %v265 = vpack.c.b16 %v260, %v255
    %v266 = vpack.c.b16 %v261, %v256
    %v267 = vpack.c.b16 %v262, %v257
    %v268 = vpack.c.b16 %v263, %v258
    %v269 = vpack.c.b16 %v264, %v259
    %v355 = vunpack.c.l.b16 %v59
    %v356 = vunpack.c.l.b16 %v60
    %v357 = vunpack.c.l.b16 %v61
    %v358 = vunpack.c.l.b16 %v62
    %v359 = vunpack.c.l.b16 %v63
    %v360 = vunpack.c.l.b16 %v64
    %v361 = vunpack.c.l.b16 %v65
    %v362 = vunpack.c.l.b16 %v66
    %v363 = vunpack.c.l.b16 %v67
    %v364 = vunpack.c.l.b16 %v68
    %v365 = vunpack.c.l.b16 %v69
    %v366 = vunpack.c.l.b16 %v70
    %v367 = vunpack.c.l.b16 %v71
    %v368 = vunpack.c.l.b16 %v72
    %v369 = vunpack.c.l.b16 %v73
    %v370 = vunpack.c.l.b16 %v74
    %v371 = vunpack.c.l.b16 %v75
    %v372 = vunpack.c.l.b16 %v76
    %v373 = vunpack.c.l.b16 %v77
    %v374 = vunpack.c.l.b16 %v78
    %v375 = vunpack.c.l.b16 %v79
    %v376 = vunpack.c.l.b16 %v80
    %v377 = vunpack.c.l.b16 %v81
    %v378 = vunpack.c.l.b16 %v82
    %v379 = vunpack.c.l.b16 %v83
    %v380 = vunpack.c.l.b16 %v84
    %v381 = vunpack.c.l.b16 %v85
    %v382 = vunpack.c.l.b16 %v86
    %v383 = vunpack.c.l.b16 %v87
    %v384 = vunpack.c.l.b16 %v88
    %v385 = vunpack.c.l.b16 %v89
    %v386 = vunpack.c.l.b16 %v90
    %v387 = vunpack.c.l.b16 %v91
    %v388 = vunpack.c.l.b16 %v92
    %v389 = vunpack.c.l.b16 %v93
    %v390 = vunpack.c.l.b16 %v94
    %v391 = vunpack.c.l.b16 %v95
    %v392 = vunpack.c.l.b16 %v96
    %v393 = vunpack.c.l.b16 %v97
    %v394 = vunpack.c.l.b16 %v98
    %v395 = vunpack.c.l.b16 %v99
    %v396 = vunpack.c.l.b16 %v100
    %v397 = vunpack.c.l.b16 %v101
    %v398 = vunpack.c.l.b16 %v102
    %v399 = vunpack.c.l.b16 %v103
    %v400 = vunpack.c.l.b16 %v104
    %v401 = vunpack.c.l.b16 %v105
    %v402 = vunpack.c.l.b16 %v106
    %v403 = vunpack.c.l.b16 %v107
    %v404 = vunpack.c.l.b16 %v108
    %v405 = vunpack.c.l.b16 %v109
    %v406 = vunpack.c.l.b16 %v110
    %v407 = vunpack.c.l.b16 %v111
    %v408 = vunpack.c.l.b16 %v112
    %v409 = vunpack.c.l.b16 %v113
    %v410 = vunpack.c.l.b16 %v114
    %v411 = vunpack.c.l.b16 %v115
    %v412 = vunpack.c.l.b16 %v116
    %v413 = vunpack.c.l.b16 %v117
    %v414 = vunpack.c.l.b16 %v118
    %v415 = vunpack.c.l.b16 %v119
    %v416 = vunpack.c.l.b16 %v120
    %v417 = vunpack.c.l.b16 %v121
    %v418 = vunpack.c.l.b16 %v122
    %v419 = vunpack.c.l.b16 %v123
    %v420 = vunpack.c.l.b16 %v124
    %v421 = vunpack.c.l.b16 %v125
    %v422 = vunpack.c.l.b16 %v126
    %v423 = vunpack.c.l.b16 %v127
    %v424 = vunpack.c.l.b16 %v128
    %v425 = vunpack.c.l.b16 %v129
    %v426 = vunpack.c.l.b16 %v130
    %v427 = vunpack.c.l.b16 %v131
    %v428 = vunpack.c.l.b16 %v132
    %v429 = vunpack.c.l.b16 %v133
    %v430 = vunpack.c.l.b16 %v134
    %v431 = vunpack.c.l.b16 %v135
    %v432 = vunpack.c.l.b16 %v136
    %v433 = vunpack.c.l.b16 %v137
    %v434 = vunpack.c.l.b16 %v138
    %v435 = vpack.c.b16 %v356, %v355
    %v436 = vpack.c.b16 %v358, %v357
    %v437 = vpack.c.b16 %v360, %v359
    %v438 = vpack.c.b16 %v362, %v361
    %v439 = vpack.c.b16 %v364, %v363
    %v440 = vpack.c.b16 %v366, %v365
    %v441 = vpack.c.b16 %v368, %v367
    %v442 = vpack.c.b16 %v370, %v369
    %v443 = vpack.c.b16 %v372, %v371
    %v444 = vpack.c.b16 %v374, %v373
    %v445 = vpack.c.b16 %v376, %v375
    %v446 = vpack.c.b16 %v378, %v377
    %v447 = vpack.c.b16 %v380, %v379
    %v448 = vpack.c.b16 %v382, %v381
    %v449 = vpack.c.b16 %v384, %v383
    %v450 = vpack.c.b16 %v386, %v385
    %v451 = vpack.c.b16 %v388, %v387
    %v452 = vpack.c.b16 %v390, %v389
    %v453 = vpack.c.b16 %v392, %v391
    %v454 = vpack.c.b16 %v394, %v393
    %v455 = vpack.c.b16 %v396, %v395
    %v456 = vpack.c.b16 %v398, %v397
    %v457 = vpack.c.b16 %v400, %v399
    %v458 = vpack.c.b16 %v402, %v401
    %v459 = vpack.c.b16 %v404, %v403
    %v460 = vpack.c.b16 %v406, %v405
    %v461 = vpack.c.b16 %v408, %v407
    %v462 = vpack.c.b16 %v410, %v409
    %v463 = vpack.c.b16 %v412, %v411
    %v464 = vpack.c.b16 %v414, %v413
    %v465 = vpack.c.b16 %v416, %v415
    %v466 = vpack.c.b16 %v418, %v417
    %v467 = vpack.c.b16 %v420, %v419
    %v468 = vpack.c.b16 %v422, %v421
    %v469 = vpack.c.b16 %v424, %v423
    %v470 = vpack.c.b16 %v426, %v425
    %v471 = vpack.c.b16 %v428, %v427
    %v472 = vpack.c.b16 %v430, %v429
    %v473 = vpack.c.b16 %v432, %v431
    %v474 = vpack.c.b16 %v434, %v433
    %515 = vmatprep.subr.bf16.mxu0 0
    %516 = vmatpush1.bf16.msra.mxu0 %v442
    %517 = vmatprep.subr.bf16.mxu0 0
    %518 = vmatpush1.bf16.msra.mxu0 %v441
    %519 = vmatprep.subr.bf16.mxu0 0
    %520 = vmatpush1.bf16.msra.mxu0 %v440
    %521 = vmatprep.subr.bf16.mxu0 0
    %522 = vmatpush1.bf16.msra.mxu0 %v439
    %523 = vmatprep.subr.bf16.mxu0 0
    %524 = vmatpush1.bf16.msra.mxu0 %v438
    %525 = vmatprep.subr.bf16.mxu0 0
    %526 = vmatpush1.bf16.msra.mxu0 %v437
    %527 = vmatprep.subr.bf16.mxu0 0
    %528 = vmatpush1.bf16.msra.mxu0 %v436
    %529 = vmatprep.subr.bf16.mxu0 0
    %530 = vmatpush1.bf16.msra.mxu0 %v435
    %531 = vmatprep.subr.bf16.mxu0 0
    %532 = vmatpush2.bf16.msra.mxu0 %v450
    %533 = vmatprep.subr.bf16.mxu0 0
    %534 = vmatpush2.bf16.msra.mxu0 %v449
    %535 = vmatprep.subr.bf16.mxu0 0
    %536 = vmatpush2.bf16.msra.mxu0 %v448
    %537 = vmatprep.subr.bf16.mxu0 0
    %538 = vmatpush2.bf16.msra.mxu0 %v447
    %539 = vmatprep.subr.bf16.mxu0 0
    %540 = vmatpush2.bf16.msra.mxu0 %v446
    %541 = vmatprep.subr.bf16.mxu0 0
    %542 = vmatpush2.bf16.msra.mxu0 %v445
    %543 = vmatprep.subr.bf16.mxu0 0
    %544 = vmatpush2.bf16.msra.mxu0 %v444
    %545 = vmatprep.subr.bf16.mxu0 0
    %546 = vmatpush2.bf16.msra.mxu0 %v443
    %547 = vmatprep.mubr.bf16.mxu0 %v266
    %548 = vmatmul.mubr.bf16.gmra.mxu0 %v265
    %v549 = vpop.f32.mrf.mxu0
    %v550 = vadd.f32 0.0, %v549
    %v551 = vpop.f32.mrf.mxu0
    %v552 = vpop.f32.mrf.mxu0
    %v553 = vadd.f32 0.0, %v552
    %v554 = vpop.f32.mrf.mxu0
    %555 = vdwg.mxu0
    %556 = vmatprep.subr.bf16.mxu0 0
    %557 = vmatpush1.bf16.msra.mxu0 %v458
    %558 = vmatprep.subr.bf16.mxu0 0
    %559 = vmatpush1.bf16.msra.mxu0 %v457
    %560 = vmatprep.subr.bf16.mxu0 0
    %561 = vmatpush1.bf16.msra.mxu0 %v456
    %562 = vmatprep.subr.bf16.mxu0 0
    %563 = vmatpush1.bf16.msra.mxu0 %v455
    %564 = vmatprep.subr.bf16.mxu0 0
    %565 = vmatpush1.bf16.msra.mxu0 %v454
    %566 = vmatprep.subr.bf16.mxu0 0
    %567 = vmatpush1.bf16.msra.mxu0 %v453
    %568 = vmatprep.subr.bf16.mxu0 0
    %569 = vmatpush1.bf16.msra.mxu0 %v452
    %570 = vmatprep.subr.bf16.mxu0 0
    %571 = vmatpush1.bf16.msra.mxu0 %v451
    %572 = vmatprep.subr.bf16.mxu0 0
    %573 = vmatpush2.bf16.msra.mxu0 %v466
    %574 = vmatprep.subr.bf16.mxu0 0
    %575 = vmatpush2.bf16.msra.mxu0 %v465
    %576 = vmatprep.subr.bf16.mxu0 0
    %577 = vmatpush2.bf16.msra.mxu0 %v464
    %578 = vmatprep.subr.bf16.mxu0 0
    %579 = vmatpush2.bf16.msra.mxu0 %v463
    %580 = vmatprep.subr.bf16.mxu0 0
    %581 = vmatpush2.bf16.msra.mxu0 %v462
    %582 = vmatprep.subr.bf16.mxu0 0
    %583 = vmatpush2.bf16.msra.mxu0 %v461
    %584 = vmatprep.subr.bf16.mxu0 0
    %585 = vmatpush2.bf16.msra.mxu0 %v460
    %586 = vmatprep.subr.bf16.mxu0 0
    %587 = vmatpush2.bf16.msra.mxu0 %v459
    %588 = vmatprep.mubr.bf16.mxu0 %v268
    %589 = vmatmul.mubr.bf16.gmra.mxu0 %v267
    %v590 = vpop.f32.mrf.mxu0
    %v591 = vadd.f32 %v550, %v590
    %v592 = vpop.f32.mrf.mxu0
    %v593 = vpop.f32.mrf.mxu0
    %v594 = vadd.f32 %v553, %v593
    %v595 = vpop.f32.mrf.mxu0
    %596 = vdwg.mxu0
    %597 = vmatprep.subr.bf16.mxu0 0
    %598 = vmatpush1.bf16.msra.mxu0 %v474
    %599 = vmatprep.subr.bf16.mxu0 0
    %600 = vmatpush1.bf16.msra.mxu0 %v473
    %601 = vmatprep.subr.bf16.mxu0 0
    %602 = vmatpush1.bf16.msra.mxu0 %v472
    %603 = vmatprep.subr.bf16.mxu0 0
    %604 = vmatpush1.bf16.msra.mxu0 %v471
    %605 = vmatprep.subr.bf16.mxu0 0
    %606 = vmatpush1.bf16.msra.mxu0 %v470
    %607 = vmatprep.subr.bf16.mxu0 0
    %608 = vmatpush1.bf16.msra.mxu0 %v469
    %609 = vmatprep.subr.bf16.mxu0 0
    %610 = vmatpush1.bf16.msra.mxu0 %v468
    %611 = vmatprep.subr.bf16.mxu0 0
    %612 = vmatpush1.bf16.msra.mxu0 %v467
    %613 = vmatprep.subr.bf16.mxu0 0
    %614 = vmatpush2.bf16.msra.mxu0 0
    %615 = vmatprep.subr.bf16.mxu0 0
    %616 = vmatpush2.bf16.msra.mxu0 0
    %617 = vmatprep.subr.bf16.mxu0 0
    %618 = vmatpush2.bf16.msra.mxu0 0
    %619 = vmatprep.subr.bf16.mxu0 0
    %620 = vmatpush2.bf16.msra.mxu0 0
    %621 = vmatprep.subr.bf16.mxu0 0
    %622 = vmatpush2.bf16.msra.mxu0 0
    %623 = vmatprep.subr.bf16.mxu0 0
    %624 = vmatpush2.bf16.msra.mxu0 0
    %625 = vmatprep.subr.bf16.mxu0 0
    %626 = vmatpush2.bf16.msra.mxu0 0
    %627 = vmatprep.subr.bf16.mxu0 0
    %628 = vmatpush2.bf16.msra.mxu0 0
    %629 = vmatprep.mubr.bf16.mxu0 0
    %630 = vmatmul.mubr.bf16.gmra.mxu0 %v269
    %v631 = vpop.f32.mrf.mxu0
    %v632 = vadd.f32 %v591, %v631
    %v633 = vpop.f32.mrf.mxu0
    %v634 = vpop.f32.mrf.mxu0
    %v635 = vadd.f32 %v594, %v634
    %v636 = vpop.f32.mrf.mxu0
    %637 = vdwg.mxu0
    %v638 = vld [vmem:[#allocation8] sm:$0xf]
    %v639 = vld [vmem:[#allocation8 + $0x4] sm:$0xf]
    %v640 = vld [vmem:[#allocation8 + $0x8] sm:$0xf]
    %v641 = vld [vmem:[#allocation8 + $0xc] sm:$0xf]
    %v642 = vld [vmem:[#allocation8 + $0x10] sm:$0xf]
    %v643 = vld [vmem:[#allocation8 + $0x14] sm:$0xf]
    %v644 = vld [vmem:[#allocation8 + $0x18] sm:$0xf]
    %v645 = vld [vmem:[#allocation8 + $0x1c] sm:$0xf]
    %v646 = vld [vmem:[#allocation8 + $0x20] sm:$0xf]
    %v647 = vld [vmem:[#allocation8 + $0x24] sm:$0xf]
    %v648 = vld [vmem:[#allocation8 + $0x28] sm:$0xf]
    %v649 = vld [vmem:[#allocation8 + $0x2c] sm:$0xf]
    %v650 = vld [vmem:[#allocation8 + $0x30] sm:$0xf]
    %v651 = vld [vmem:[#allocation8 + $0x34] sm:$0xf]
    %v652 = vld [vmem:[#allocation8 + $0x38] sm:$0xf]
    %v653 = vld [vmem:[#allocation8 + $0x3c] sm:$0xf]
    %v654 = vld [vmem:[#allocation8 + $0x40] sm:$0xf]
    %v655 = vld [vmem:[#allocation8 + $0x44] sm:$0xf]
    %v656 = vld [vmem:[#allocation8 + $0x48] sm:$0xf]
    %v657 = vld [vmem:[#allocation8 + $0x4c] sm:$0xf]
    %v658 = vld [vmem:[#allocation8 + $0x50] sm:$0xf]
    %v659 = vld [vmem:[#allocation8 + $0x54] sm:$0xf]
    %v660 = vld [vmem:[#allocation8 + $0x58] sm:$0xf]
    %v661 = vld [vmem:[#allocation8 + $0x5c] sm:$0xf]
    %v662 = vld [vmem:[#allocation8 + $0x60] sm:$0xf]
    %v663 = vld [vmem:[#allocation8 + $0x64] sm:$0xf]
    %v664 = vld [vmem:[#allocation8 + $0x68] sm:$0xf]
    %v665 = vld [vmem:[#allocation8 + $0x6c] sm:$0xf]
    %v666 = vld [vmem:[#allocation8 + $0x70] sm:$0xf]
    %v667 = vld [vmem:[#allocation8 + $0x74] sm:$0xf]
    %v668 = vld [vmem:[#allocation8 + $0x78] sm:$0xf]
    %v669 = vld [vmem:[#allocation8 + $0x7c] sm:$0xf]
    %v670 = vld [vmem:[#allocation8 + $0x80] sm:$0xf]
    %v671 = vld [vmem:[#allocation8 + $0x84] sm:$0xf]
    %v672 = vld [vmem:[#allocation8 + $0x88] sm:$0xf]
    %v673 = vld [vmem:[#allocation8 + $0x8c] sm:$0xf]
    %v674 = vld [vmem:[#allocation8 + $0x90] sm:$0xf]
    %v675 = vld [vmem:[#allocation8 + $0x94] sm:$0xf]
    %v676 = vld [vmem:[#allocation8 + $0x98] sm:$0xf]
    %v677 = vld [vmem:[#allocation8 + $0x9c] sm:$0xf]
    %v678 = vld [vmem:[#allocation8 + $0xa0] sm:$0xf]
    %v679 = vld [vmem:[#allocation8 + $0xa4] sm:$0xf]
    %v680 = vld [vmem:[#allocation8 + $0xa8] sm:$0xf]
    %v681 = vld [vmem:[#allocation8 + $0xac] sm:$0xf]
    %v682 = vld [vmem:[#allocation8 + $0xb0] sm:$0xf]
    %v683 = vld [vmem:[#allocation8 + $0xb4] sm:$0xf]
    %v684 = vld [vmem:[#allocation8 + $0xb8] sm:$0xf]
    %v685 = vld [vmem:[#allocation8 + $0xbc] sm:$0xf]
    %v686 = vld [vmem:[#allocation8 + $0xc0] sm:$0xf]
    %v687 = vld [vmem:[#allocation8 + $0xc4] sm:$0xf]
    %v688 = vld [vmem:[#allocation8 + $0xc8] sm:$0xf]
    %v689 = vld [vmem:[#allocation8 + $0xcc] sm:$0xf]
    %v690 = vld [vmem:[#allocation8 + $0xd0] sm:$0xf]
    %v691 = vld [vmem:[#allocation8 + $0xd4] sm:$0xf]
    %v692 = vld [vmem:[#allocation8 + $0xd8] sm:$0xf]
    %v693 = vld [vmem:[#allocation8 + $0xdc] sm:$0xf]
    %v694 = vld [vmem:[#allocation8 + $0xe0] sm:$0xf]
    %v695 = vld [vmem:[#allocation8 + $0xe4] sm:$0xf]
    %v696 = vld [vmem:[#allocation8 + $0xe8] sm:$0xf]
    %v697 = vld [vmem:[#allocation8 + $0xec] sm:$0xf]
    %v698 = vld [vmem:[#allocation8 + $0xf0] sm:$0xf]
    %v699 = vld [vmem:[#allocation8 + $0xf4] sm:$0xf]
    %v700 = vld [vmem:[#allocation8 + $0xf8] sm:$0xf]
    %v701 = vld [vmem:[#allocation8 + $0xfc] sm:$0xf]
    %v702 = vld [vmem:[#allocation8 + $0x100] sm:$0xf]
    %v703 = vld [vmem:[#allocation8 + $0x104] sm:$0xf]
    %v704 = vld [vmem:[#allocation8 + $0x108] sm:$0xf]
    %v705 = vld [vmem:[#allocation8 + $0x10c] sm:$0xf]
    %v706 = vld [vmem:[#allocation8 + $0x110] sm:$0xf]
    %v707 = vld [vmem:[#allocation8 + $0x114] sm:$0xf]
    %v708 = vld [vmem:[#allocation8 + $0x118] sm:$0xf]
    %v709 = vld [vmem:[#allocation8 + $0x11c] sm:$0xf]
    %v710 = vld [vmem:[#allocation8 + $0x120] sm:$0xf]
    %v711 = vld [vmem:[#allocation8 + $0x124] sm:$0xf]
    %v712 = vld [vmem:[#allocation8 + $0x128] sm:$0xf]
    %v713 = vld [vmem:[#allocation8 + $0x12c] sm:$0xf]
    %v714 = vld [vmem:[#allocation8 + $0x130] sm:$0xf]
    %v715 = vld [vmem:[#allocation8 + $0x134] sm:$0xf]
    %v716 = vld [vmem:[#allocation8 + $0x138] sm:$0xf]
    %v717 = vld [vmem:[#allocation8 + $0x13c] sm:$0xf]
    %v718 = vsub.f32 0.0, %v632
    %v719 = vsub.f32 0.0, %v635
    %v720 = vmul.f32 %v718, 1.442695
    %v721 = vpow.pop %v720
    %v722 = vmul.f32 %v719, 1.442695
    %v723 = vpow.pop %v722
    %v724 = vadd.f32 %v721, 1.0
    %v725 = vadd.f32 %v723, 1.0
    %v726 = vrcp.pop %v724
    %v727 = vrcp.pop %v725
    %v728 = vmul.f32 %v632, %v726
    %v729 = vmul.f32 %v635, %v727
    %v730 = vpack.c.bf16 %v729, %v728
    %v732 = vunpack.c.l.b16 %v730
    %v733 = vunpack.c.h.b16 %v730
    %v734 = vpack.c.b16 %v732, %v732
    %v735 = vpack.c.b16 %v733, %v733
    %738 = vst [vmem:[#allocation2] sm:$0xf] %v734
    %739 = vst [vmem:[#allocation2 + $0x14] sm:$0xf] %v735
    %v740 = vpack.c.bf16 %v727, %v726
    %v742 = vunpack.c.l.b16 %v740
    %v743 = vunpack.c.h.b16 %v740
    %v744 = vpack.c.b16 %v742, %v742
    %v745 = vpack.c.b16 %v743, %v743
    %748 = vst [vmem:[#allocation2 + $0x8] sm:$0xf] %v744
    %749 = vst [vmem:[#allocation2 + $0x1c] sm:$0xf] %v745
    %v750 = vmul.f32 %v726, %v726
    %v751 = vmul.f32 %v727, %v727
    %v752 = vpack.c.bf16 %v751, %v750
    %v754 = vunpack.c.l.b16 %v752
    %v755 = vunpack.c.h.b16 %v752
    %v756 = vpack.c.b16 %v754, %v754
    %v757 = vpack.c.b16 %v755, %v755
    %760 = vst [vmem:[#allocation2 + $0xc] sm:$0xf] %v756
    %761 = vst [vmem:[#allocation2 + $0x20] sm:$0xf] %v757
    %v762 = vmul.f32 %v750, %v726
    %v763 = vmul.f32 %v751, %v727
    %v764 = vpack.c.bf16 %v763, %v762
    %v766 = vunpack.c.l.b16 %v764
    %v767 = vunpack.c.h.b16 %v764
    %v768 = vpack.c.b16 %v766, %v766
    %v769 = vpack.c.b16 %v767, %v767
    %772 = vst [vmem:[#allocation2 + $0x10] sm:$0xf] %v768
    %773 = vst [vmem:[#allocation2 + $0x24] sm:$0xf] %v769
    %v774 = vsub.f32 1.0, %v726
    %v775 = vsub.f32 1.0, %v727
    %v776 = vld [vmem:[#allocation2 + $0xc] sm:$0xf]
    %v777 = vld [vmem:[#allocation2 + $0x20] sm:$0xf]
    %v778 = vunpack.c.l.bf16 %v776
    %v779 = vunpack.c.l.bf16 %v777
    %v780 = vmul.f32 %v778, %v774
    %v781 = vmul.f32 %v779, %v775
    %v782 = vpack.c.bf16 %v781, %v780
    %v784 = vunpack.c.l.b16 %v782
    %v785 = vunpack.c.h.b16 %v782
    %v786 = vpack.c.b16 %v784, %v784
    %v787 = vpack.c.b16 %v785, %v785
    %790 = vst [vmem:[#allocation2 + $0xc] sm:$0xf] %v786
    %791 = vst [vmem:[#allocation2 + $0x20] sm:$0xf] %v787
    %v792 = vmul.f32 %v774, %v774
    %v793 = vmul.f32 %v775, %v775
    %v794 = vld [vmem:[#allocation2 + $0x8] sm:$0xf]
    %v795 = vld [vmem:[#allocation2 + $0x1c] sm:$0xf]
    %v796 = vunpack.c.l.bf16 %v794
    %v797 = vunpack.c.l.bf16 %v795
    %v798 = vmul.f32 %v796, %v792
    %v799 = vmul.f32 %v797, %v793
    %v800 = vpack.c.bf16 %v799, %v798
    %v802 = vunpack.c.l.b16 %v800
    %v803 = vunpack.c.h.b16 %v800
    %v804 = vpack.c.b16 %v802, %v802
    %v805 = vpack.c.b16 %v803, %v803
    %808 = vst [vmem:[#allocation2 + $0x8] sm:$0xf] %v804
    %809 = vst [vmem:[#allocation2 + $0x1c] sm:$0xf] %v805
    %v810 = vmul.f32 %v792, %v774
    %v811 = vmul.f32 %v793, %v775
    %v812 = vpack.c.bf16 %v811, %v810
    %v814 = vunpack.c.l.b16 %v812
    %v815 = vunpack.c.h.b16 %v812
    %v816 = vpack.c.b16 %v814, %v814
    %v817 = vpack.c.b16 %v815, %v815
    %820 = vst [vmem:[#allocation2 + $0x4] sm:$0xf] %v816
    %821 = vst [vmem:[#allocation2 + $0x18] sm:$0xf] %v817
    %v822 = vld [vmem:[#allocation2] sm:$0xff]
    %v823 = vld [vmem:[#allocation2 + $0x8] sm:$0xff]
    %v824 = vld [vmem:[#allocation2 + $0x10] sm:$0xf]
    %v825 = vld [vmem:[#allocation2 + $0x14] sm:$0xff]
    %v826 = vld [vmem:[#allocation2 + $0x1c] sm:$0xff]
    %v827 = vld [vmem:[#allocation2 + $0x24] sm:$0xf]
    %v834 = vunpack.c.l.b16 %v822
    %v835 = vunpack.c.h.b16 %v822
    %v836 = vunpack.c.l.b16 %v823
    %v837 = vunpack.c.h.b16 %v823
    %v838 = vunpack.c.l.b16 %v824
    %v839 = vunpack.c.l.b16 %v825
    %v840 = vunpack.c.h.b16 %v825
    %v841 = vunpack.c.l.b16 %v826
    %v842 = vunpack.c.h.b16 %v826
    %v843 = vunpack.c.l.b16 %v827
    %v844 = vpack.c.b16 %v839, %v834
    %v845 = vpack.c.b16 %v840, %v835
    %v846 = vpack.c.b16 %v841, %v836
    %v847 = vpack.c.b16 %v842, %v837
    %v848 = vpack.c.b16 %v843, %v838
    %v934 = vunpack.c.l.b16 %v638
    %v935 = vunpack.c.l.b16 %v639
    %v936 = vunpack.c.l.b16 %v640
    %v937 = vunpack.c.l.b16 %v641
    %v938 = vunpack.c.l.b16 %v642
    %v939 = vunpack.c.l.b16 %v643
    %v940 = vunpack.c.l.b16 %v644
    %v941 = vunpack.c.l.b16 %v645
    %v942 = vunpack.c.l.b16 %v646
    %v943 = vunpack.c.l.b16 %v647
    %v944 = vunpack.c.l.b16 %v648
    %v945 = vunpack.c.l.b16 %v649
    %v946 = vunpack.c.l.b16 %v650
    %v947 = vunpack.c.l.b16 %v651
    %v948 = vunpack.c.l.b16 %v652
    %v949 = vunpack.c.l.b16 %v653
    %v950 = vunpack.c.l.b16 %v654
    %v951 = vunpack.c.l.b16 %v655
    %v952 = vunpack.c.l.b16 %v656
    %v953 = vunpack.c.l.b16 %v657
    %v954 = vunpack.c.l.b16 %v658
    %v955 = vunpack.c.l.b16 %v659
    %v956 = vunpack.c.l.b16 %v660
    %v957 = vunpack.c.l.b16 %v661
    %v958 = vunpack.c.l.b16 %v662
    %v959 = vunpack.c.l.b16 %v663
    %v960 = vunpack.c.l.b16 %v664
    %v961 = vunpack.c.l.b16 %v665
    %v962 = vunpack.c.l.b16 %v666
    %v963 = vunpack.c.l.b16 %v667
    %v964 = vunpack.c.l.b16 %v668
    %v965 = vunpack.c.l.b16 %v669
    %v966 = vunpack.c.l.b16 %v670
    %v967 = vunpack.c.l.b16 %v671
    %v968 = vunpack.c.l.b16 %v672
    %v969 = vunpack.c.l.b16 %v673
    %v970 = vunpack.c.l.b16 %v674
    %v971 = vunpack.c.l.b16 %v675
    %v972 = vunpack.c.l.b16 %v676
    %v973 = vunpack.c.l.b16 %v677
    %v974 = vunpack.c.l.b16 %v678
    %v975 = vunpack.c.l.b16 %v679
    %v976 = vunpack.c.l.b16 %v680
    %v977 = vunpack.c.l.b16 %v681
    %v978 = vunpack.c.l.b16 %v682
    %v979 = vunpack.c.l.b16 %v683
    %v980 = vunpack.c.l.b16 %v684
    %v981 = vunpack.c.l.b16 %v685
    %v982 = vunpack.c.l.b16 %v686
    %v983 = vunpack.c.l.b16 %v687
    %v984 = vunpack.c.l.b16 %v688
    %v985 = vunpack.c.l.b16 %v689
    %v986 = vunpack.c.l.b16 %v690
    %v987 = vunpack.c.l.b16 %v691
    %v988 = vunpack.c.l.b16 %v692
    %v989 = vunpack.c.l.b16 %v693
    %v990 = vunpack.c.l.b16 %v694
    %v991 = vunpack.c.l.b16 %v695
    %v992 = vunpack.c.l.b16 %v696
    %v993 = vunpack.c.l.b16 %v697
    %v994 = vunpack.c.l.b16 %v698
    %v995 = vunpack.c.l.b16 %v699
    %v996 = vunpack.c.l.b16 %v700
    %v997 = vunpack.c.l.b16 %v701
    %v998 = vunpack.c.l.b16 %v702
    %v999 = vunpack.c.l.b16 %v703
    %v1000 = vunpack.c.l.b16 %v704
    %v1001 = vunpack.c.l.b16 %v705
    %v1002 = vunpack.c.l.b16 %v706
    %v1003 = vunpack.c.l.b16 %v707
    %v1004 = vunpack.c.l.b16 %v708
    %v1005 = vunpack.c.l.b16 %v709
    %v1006 = vunpack.c.l.b16 %v710
    %v1007 = vunpack.c.l.b16 %v711
    %v1008 = vunpack.c.l.b16 %v712
    %v1009 = vunpack.c.l.b16 %v713
    %v1010 = vunpack.c.l.b16 %v714
    %v1011 = vunpack.c.l.b16 %v715
    %v1012 = vunpack.c.l.b16 %v716
    %v1013 = vunpack.c.l.b16 %v717
    %v1014 = vpack.c.b16 %v935, %v934
    %v1015 = vpack.c.b16 %v937, %v936
    %v1016 = vpack.c.b16 %v939, %v938
    %v1017 = vpack.c.b16 %v941, %v940
    %v1018 = vpack.c.b16 %v943, %v942
    %v1019 = vpack.c.b16 %v945, %v944
    %v1020 = vpack.c.b16 %v947, %v946
    %v1021 = vpack.c.b16 %v949, %v948
    %v1022 = vpack.c.b16 %v951, %v950
    %v1023 = vpack.c.b16 %v953, %v952
    %v1024 = vpack.c.b16 %v955, %v954
    %v1025 = vpack.c.b16 %v957, %v956
    %v1026 = vpack.c.b16 %v959, %v958
    %v1027 = vpack.c.b16 %v961, %v960
    %v1028 = vpack.c.b16 %v963, %v962
    %v1029 = vpack.c.b16 %v965, %v964
    %v1030 = vpack.c.b16 %v967, %v966
    %v1031 = vpack.c.b16 %v969, %v968
    %v1032 = vpack.c.b16 %v971, %v970
    %v1033 = vpack.c.b16 %v973, %v972
    %v1034 = vpack.c.b16 %v975, %v974
    %v1035 = vpack.c.b16 %v977, %v976
    %v1036 = vpack.c.b16 %v979, %v978
    %v1037 = vpack.c.b16 %v981, %v980
    %v1038 = vpack.c.b16 %v983, %v982
    %v1039 = vpack.c.b16 %v985, %v984
    %v1040 = vpack.c.b16 %v987, %v986
    %v1041 = vpack.c.b16 %v989, %v988
    %v1042 = vpack.c.b16 %v991, %v990
    %v1043 = vpack.c.b16 %v993, %v992
    %v1044 = vpack.c.b16 %v995, %v994
    %v1045 = vpack.c.b16 %v997, %v996
    %v1046 = vpack.c.b16 %v999, %v998
    %v1047 = vpack.c.b16 %v1001, %v1000
    %v1048 = vpack.c.b16 %v1003, %v1002
    %v1049 = vpack.c.b16 %v1005, %v1004
    %v1050 = vpack.c.b16 %v1007, %v1006
    %v1051 = vpack.c.b16 %v1009, %v1008
    %v1052 = vpack.c.b16 %v1011, %v1010
    %v1053 = vpack.c.b16 %v1013, %v1012
    %1094 = vmatprep.subr.bf16.mxu0 0
    %1095 = vmatpush1.bf16.msra.mxu0 %v1021
    %1096 = vmatprep.subr.bf16.mxu0 0
    %1097 = vmatpush1.bf16.msra.mxu0 %v1020
    %1098 = vmatprep.subr.bf16.mxu0 0
    %1099 = vmatpush1.bf16.msra.mxu0 %v1019
    %1100 = vmatprep.subr.bf16.mxu0 0
    %1101 = vmatpush1.bf16.msra.mxu0 %v1018
    %1102 = vmatprep.subr.bf16.mxu0 0
    %1103 = vmatpush1.bf16.msra.mxu0 %v1017
    %1104 = vmatprep.subr.bf16.mxu0 0
    %1105 = vmatpush1.bf16.msra.mxu0 %v1016
    %1106 = vmatprep.subr.bf16.mxu0 0
    %1107 = vmatpush1.bf16.msra.mxu0 %v1015
    %1108 = vmatprep.subr.bf16.mxu0 0
    %1109 = vmatpush1.bf16.msra.mxu0 %v1014
    %1110 = vmatprep.subr.bf16.mxu0 0
    %1111 = vmatpush2.bf16.msra.mxu0 %v1029
    %1112 = vmatprep.subr.bf16.mxu0 0
    %1113 = vmatpush2.bf16.msra.mxu0 %v1028
    %1114 = vmatprep.subr.bf16.mxu0 0
    %1115 = vmatpush2.bf16.msra.mxu0 %v1027
    %1116 = vmatprep.subr.bf16.mxu0 0
    %1117 = vmatpush2.bf16.msra.mxu0 %v1026
    %1118 = vmatprep.subr.bf16.mxu0 0
    %1119 = vmatpush2.bf16.msra.mxu0 %v1025
    %1120 = vmatprep.subr.bf16.mxu0 0
    %1121 = vmatpush2.bf16.msra.mxu0 %v1024
    %1122 = vmatprep.subr.bf16.mxu0 0
    %1123 = vmatpush2.bf16.msra.mxu0 %v1023
    %1124 = vmatprep.subr.bf16.mxu0 0
    %1125 = vmatpush2.bf16.msra.mxu0 %v1022
    %1126 = vmatprep.mubr.bf16.mxu0 %v845
    %1127 = vmatmul.mubr.bf16.gmra.mxu0 %v844
    %v1128 = vpop.f32.mrf.mxu0
    %v1129 = vadd.f32 0.0, %v1128
    %v1130 = vpop.f32.mrf.mxu0
    %v1131 = vpop.f32.mrf.mxu0
    %v1132 = vadd.f32 0.0, %v1131
    %v1133 = vpop.f32.mrf.mxu0
    %1134 = vdwg.mxu0
    %1135 = vmatprep.subr.bf16.mxu0 0
    %1136 = vmatpush1.bf16.msra.mxu0 %v1037
    %1137 = vmatprep.subr.bf16.mxu0 0
    %1138 = vmatpush1.bf16.msra.mxu0 %v1036
    %1139 = vmatprep.subr.bf16.mxu0 0
    %1140 = vmatpush1.bf16.msra.mxu0 %v1035
    %1141 = vmatprep.subr.bf16.mxu0 0
    %1142 = vmatpush1.bf16.msra.mxu0 %v1034
    %1143 = vmatprep.subr.bf16.mxu0 0
    %1144 = vmatpush1.bf16.msra.mxu0 %v1033
    %1145 = vmatprep.subr.bf16.mxu0 0
    %1146 = vmatpush1.bf16.msra.mxu0 %v1032
    %1147 = vmatprep.subr.bf16.mxu0 0
    %1148 = vmatpush1.bf16.msra.mxu0 %v1031
    %1149 = vmatprep.subr.bf16.mxu0 0
    %1150 = vmatpush1.bf16.msra.mxu0 %v1030
    %1151 = vmatprep.subr.bf16.mxu0 0
    %1152 = vmatpush2.bf16.msra.mxu0 %v1045
    %1153 = vmatprep.subr.bf16.mxu0 0
    %1154 = vmatpush2.bf16.msra.mxu0 %v1044
    %1155 = vmatprep.subr.bf16.mxu0 0
    %1156 = vmatpush2.bf16.msra.mxu0 %v1043
    %1157 = vmatprep.subr.bf16.mxu0 0
    %1158 = vmatpush2.bf16.msra.mxu0 %v1042
    %1159 = vmatprep.subr.bf16.mxu0 0
    %1160 = vmatpush2.bf16.msra.mxu0 %v1041
    %1161 = vmatprep.subr.bf16.mxu0 0
    %1162 = vmatpush2.bf16.msra.mxu0 %v1040
    %1163 = vmatprep.subr.bf16.mxu0 0
    %1164 = vmatpush2.bf16.msra.mxu0 %v1039
    %1165 = vmatprep.subr.bf16.mxu0 0
    %1166 = vmatpush2.bf16.msra.mxu0 %v1038
    %1167 = vmatprep.mubr.bf16.mxu0 %v847
    %1168 = vmatmul.mubr.bf16.gmra.mxu0 %v846
    %v1169 = vpop.f32.mrf.mxu0
    %v1170 = vadd.f32 %v1129, %v1169
    %v1171 = vpop.f32.mrf.mxu0
    %v1172 = vpop.f32.mrf.mxu0
    %v1173 = vadd.f32 %v1132, %v1172
    %v1174 = vpop.f32.mrf.mxu0
    %1175 = vdwg.mxu0
    %1176 = vmatprep.subr.bf16.mxu0 0
    %1177 = vmatpush1.bf16.msra.mxu0 %v1053
    %1178 = vmatprep.subr.bf16.mxu0 0
    %1179 = vmatpush1.bf16.msra.mxu0 %v1052
    %1180 = vmatprep.subr.bf16.mxu0 0
    %1181 = vmatpush1.bf16.msra.mxu0 %v1051
    %1182 = vmatprep.subr.bf16.mxu0 0
    %1183 = vmatpush1.bf16.msra.mxu0 %v1050
    %1184 = vmatprep.subr.bf16.mxu0 0
    %1185 = vmatpush1.bf16.msra.mxu0 %v1049
    %1186 = vmatprep.subr.bf16.mxu0 0
    %1187 = vmatpush1.bf16.msra.mxu0 %v1048
    %1188 = vmatprep.subr.bf16.mxu0 0
    %1189 = vmatpush1.bf16.msra.mxu0 %v1047
    %1190 = vmatprep.subr.bf16.mxu0 0
    %1191 = vmatpush1.bf16.msra.mxu0 %v1046
    %1192 = vmatprep.subr.bf16.mxu0 0
    %1193 = vmatpush2.bf16.msra.mxu0 0
    %1194 = vmatprep.subr.bf16.mxu0 0
    %1195 = vmatpush2.bf16.msra.mxu0 0
    %1196 = vmatprep.subr.bf16.mxu0 0
    %1197 = vmatpush2.bf16.msra.mxu0 0
    %1198 = vmatprep.subr.bf16.mxu0 0
    %1199 = vmatpush2.bf16.msra.mxu0 0
    %1200 = vmatprep.subr.bf16.mxu0 0
    %1201 = vmatpush2.bf16.msra.mxu0 0
    %1202 = vmatprep.subr.bf16.mxu0 0
    %1203 = vmatpush2.bf16.msra.mxu0 0
    %1204 = vmatprep.subr.bf16.mxu0 0
    %1205 = vmatpush2.bf16.msra.mxu0 0
    %1206 = vmatprep.subr.bf16.mxu0 0
    %1207 = vmatpush2.bf16.msra.mxu0 0
    %1208 = vmatprep.mubr.bf16.mxu0 0
    %1209 = vmatmul.mubr.bf16.gmra.mxu0 %v848
    %v1210 = vpop.f32.mrf.mxu0
    %v1211 = vadd.f32 %v1170, %v1210
    %v1212 = vpop.f32.mrf.mxu0
    %v1213 = vpop.f32.mrf.mxu0
    %v1214 = vadd.f32 %v1173, %v1213
    %v1215 = vpop.f32.mrf.mxu0
    %1216 = vdwg.mxu0
    %1217 = vst [vmem:[#allocation9] sm:$0xff] %v1211
    %1218 = vst [vmem:[#allocation9 + $0x8] sm:$0xff] %v1214
    // Predicated region
    $region26: #{tpu_custom_call.1} parent=1 // pred_check
      _
    $region27: #{tpu_custom_call.1} parent=1 // pred_check_branch
      %1220 = sbr.rel (0) target = $region29
    $region28: #{tpu_custom_call.1} parent=1 // pred_region
      %s1222 = ssub.s32 256, 256
      %1223 = vsyncadd [#allocation5], %s1222
      %s1224 = sshll.u32 [#allocation9], 4
      %s1225 = int_to_ptr.vmem [resolvable:$true] %s1224
      %1230 = dma.vmem_to_hbm [thread:$0]  %s1225, 256, %s3, [#allocation5], 128, 128, 8
    $region29: #{tpu_custom_call.1} parent=1 // pred_fallthru
      _
    // Predicated region
    $region30: #{tpu_custom_call.1} parent=1 // pred_check
      _
    $region31: #{tpu_custom_call.1} parent=1 // pred_check_branch
      %1232 = sbr.rel (0) target = $region33
    $region32: #{tpu_custom_call.1} parent=1 // pred_region
      %1233 = dma.done [#allocation5], 256
    $region33: #{tpu_custom_call.1} parent=1 // pred_fallthru
      _
    %1234 = vsyncpa [#allocation4], 1
    %1235 = vsyncpa [#allocation7], 1
    %1236 = vsyncpa [#allocation5], 1

</llo_original>
